<compile_context>
chip_gen: v5e
topology: v5e:2x2
jax: 0.10.0
libtpu: 0.0.40
codegen_flags: <defaults>
</compile_context>

<pallas_src>
import functools

import jax
import jax.numpy as jnp
from jax.experimental import pallas as pl
from jax.experimental.pallas import tpu as pltpu


LANE = 128


def _round_up(x: int, m: int) -> int:
    return ((x + m - 1) // m) * m


def _pad2(a, rows, cols):
    r, c = a.shape
    return jnp.pad(a, ((0, rows - r), (0, cols - c)))


def _metric_kernel(x_ref, w1_ref, b1_ref, w2_ref, b2_ref, wc_ref, bc_ref,
                   emb_ref, logits_ref):
    feats = x_ref[...]                                                   # [TB, D_in] bf16

    # Linear(input_dim, 2*embedding_dim) + ReLU   (f32 accumulation on MXU)
    h = jnp.dot(feats, w1_ref[...], preferred_element_type=jnp.float32)
    h = jnp.maximum(h + b1_ref[...], 0.0)                                # [TB, H2p] f32

    # Dropout(p=0.5) is identity at inference time.

    # Linear(2*embedding_dim, embedding_dim)
    e = jnp.dot(h.astype(w2_ref.dtype), w2_ref[...],
                preferred_element_type=jnp.float32)
    e = e + b2_ref[...]                                                  # [TB, Ep] f32

    # Classifier matmul issued BEFORE the normalization; the per-row scale commutes:
    #   (e * inv) @ Wc == (e @ Wc) * inv
    ewc = jnp.dot(e.astype(wc_ref.dtype), wc_ref[...],
                  preferred_element_type=jnp.float32)                    # [TB, NCp] f32

    # L2 normalization along dim=1. rsqrt(max(ss, eps^2)) == 1 / max(||e||, eps), eps=1e-12,
    # matching torch.nn.functional.normalize semantics. Padded columns of e are exactly 0
    # and do not perturb the sum of squares.
    ss = jnp.sum(e * e, axis=1, keepdims=True)                           # [TB, 1]
    inv = jax.lax.rsqrt(jnp.maximum(ss, 1e-24))

    emb_ref[...] = e * inv
    logits_ref[...] = ewc * inv + bc_ref[...]


@functools.partial(jax.jit, static_argnames=("block_b",))
def metric_learning_forward(x_nchw, params, *, block_b: int = 128):
    """Run the MetricLearningNetwork forward pass.

    Args:
      x_nchw: [B, C, H, W] float32 input (PyTorch NCHW layout).
      params: dict with w1 [D_in, 2E], b1 [1, 2E], w2 [2E, E], b2 [1, E],
              wc [E, num_classes], bc [1, num_classes].
      block_b: max batch tile size.

    Returns:
      (embeddings [B, E] float32, logits [B, num_classes] float32)
    """
    B = x_nchw.shape[0]
    feats = x_nchw.reshape(B, -1)                        # flatten feature extractor (glue)
    D_in = feats.shape[1]

    w1, b1 = params["w1"], params["b1"]
    w2, b2 = params["w2"], params["b2"]
    wc, bc = params["wc"], params["bc"]

    H2 = w1.shape[1]
    E = w2.shape[1]
    NC = wc.shape[1]

    # Lane-dense padded dims.
    H2p = _round_up(H2, LANE)
    Ep = _round_up(E, LANE)
    NCp = _round_up(NC, LANE)

    # Batch tiling (sublane-aligned); pad B to a whole number of tiles.
    TB = min(block_b, max(8, _round_up(B, 8)))
    B_pad = _round_up(B, TB)

    # Zero-pad + cast. bf16 weights/activations, f32 biases (added post f32 accumulation).
    feats_p = jnp.pad(feats.astype(jnp.bfloat16), ((0, B_pad - B), (0, 0)))
    w1_p = _pad2(w1, D_in, H2p).astype(jnp.bfloat16)
    b1_p = _pad2(b1, 1, H2p).astype(jnp.float32)
    w2_p = _pad2(w2, H2p, Ep).astype(jnp.bfloat16)
    b2_p = _pad2(b2, 1, Ep).astype(jnp.float32)
    wc_p = _pad2(wc, Ep, NCp).astype(jnp.bfloat16)
    bc_p = _pad2(bc, 1, NCp).astype(jnp.float32)

    # VMEM budget: resident weights + double-buffered activation/output tiles + headroom.
    bytes_w = (D_in * H2p + H2p * Ep + Ep * NCp) * 2
    bytes_b = (H2p + Ep + NCp) * 4
    bytes_x = 2 * TB * D_in * 2
    bytes_o = 2 * TB * (Ep + NCp) * 4
    vmem_limit = int(min(48 << 20, max(8 << 20, 2 * (bytes_w + bytes_b + bytes_x + bytes_o))))

    grid = (B_pad // TB,)
    batch_spec = lambda cols: pl.BlockSpec((TB, cols), lambda i: (i, 0))
    weight_spec = lambda shape: pl.BlockSpec(shape, lambda i: (0, 0))

    emb_p, logits_p = pl.pallas_call(
        _metric_kernel,
        out_shape=(
            jax.ShapeDtypeStruct((B_pad, Ep), jnp.float32),
            jax.ShapeDtypeStruct((B_pad, NCp), jnp.float32),
        ),
        grid=grid,
        in_specs=[
            batch_spec(D_in),                     # activations: pipelined per batch tile
            weight_spec((D_in, H2p)), weight_spec((1, H2p)),
            weight_spec((H2p, Ep)),   weight_spec((1, Ep)),
            weight_spec((Ep, NCp)),   weight_spec((1, NCp)),
        ],
        out_specs=(
            batch_spec(Ep),
            batch_spec(NCp),
        ),
        compiler_params=pltpu.CompilerParams(
            dimension_semantics=("parallel",),
            vmem_limit_bytes=vmem_limit,
        ),
    )(feats_p, w1_p, b1_p, w2_p, b2_p, wc_p, bc_p)

    return emb_p[:B, :E], logits_p[:B, :NC]


def init_params(key, input_dim, embedding_dim, num_classes):
    """Deterministic synthetic parameter init (matches shapes from __init__)."""
    k1, k2, k3, k4, k5, k6 = jax.random.split(key, 6)
    scale1 = 1.0 / jnp.sqrt(input_dim)
    scale2 = 1.0 / jnp.sqrt(2 * embedding_dim)
    scale3 = 1.0 / jnp.sqrt(embedding_dim)
    return {
        "w1": jax.random.normal(k1, (input_dim, 2 * embedding_dim), jnp.float32) * scale1,
        "b1": jax.random.normal(k4, (1, 2 * embedding_dim), jnp.float32) * scale1,
        "w2": jax.random.normal(k2, (2 * embedding_dim, embedding_dim), jnp.float32) * scale2,
        "b2": jax.random.normal(k5, (1, embedding_dim), jnp.float32) * scale2,
        "wc": jax.random.normal(k3, (embedding_dim, num_classes), jnp.float32) * scale3,
        "bc": jax.random.normal(k6, (1, num_classes), jnp.float32) * scale3,
    }


if __name__ == "__main__":
    # Small, deterministic example consistent with the module's forward:
    # batch=2, channels=4, spatial=16x16 -> input_dim = 4*16*16 = 1024
    B, C, H, W = 2, 4, 16, 16
    embedding_dim = 32
    num_classes = 10
    input_dim = C * H * W

    key = jax.random.PRNGKey(0)
    kx, kp = jax.random.split(key)
    x = jax.random.normal(kx, (B, C, H, W), jnp.float32)
    params = init_params(kp, input_dim, embedding_dim, num_classes)

    emb, logits = metric_learning_forward(x, params)
    emb = jax.block_until_ready(emb)
    logits = jax.block_until_ready(logits)

    # Pure-JAX f32 reference (same math as the PyTorch module).
    feats = x.reshape(B, -1)
    h_ref = jnp.maximum(feats @ params["w1"] + params["b1"], 0.0)
    e_ref = h_ref @ params["w2"] + params["b2"]
    emb_ref = e_ref / jnp.maximum(
        jnp.sqrt(jnp.sum(e_ref * e_ref, axis=1, keepdims=True)), 1e-12)
    logits_ref = emb_ref @ params["wc"] + params["bc"]

    assert emb.shape == (B, embedding_dim)
    assert logits.shape == (B, num_classes)
    # bf16 weights/activations in the kernel -> compare against the f32 reference with a
    # bf16-appropriate tolerance.
    assert jnp.allclose(emb, emb_ref, atol=3e-2, rtol=3e-2), (
        float(jnp.max(jnp.abs(emb - emb_ref))))
    assert jnp.allclose(logits, logits_ref, atol=3e-2, rtol=3e-2), (
        float(jnp.max(jnp.abs(logits - logits_ref))))
    # Embeddings must be unit-norm along dim=1 (normalization itself is done in f32).
    assert jnp.allclose(jnp.linalg.norm(emb, axis=1), 1.0, atol=1e-3)

    print("KERNEL_OK")
</pallas_src>

<mosaic_0001>
module attributes {stable_mosaic.version = 11 : i64} {
  func.func @_metric_kernel(%arg0: i32, %arg1: memref<8x1024xbf16, #tpu.memory_space<vmem>>, %arg2: memref<1024x128xbf16, #tpu.memory_space<vmem>>, %arg3: memref<1x128xf32, #tpu.memory_space<vmem>>, %arg4: memref<128x128xbf16, #tpu.memory_space<vmem>>, %arg5: memref<1x128xf32, #tpu.memory_space<vmem>>, %arg6: memref<128x128xbf16, #tpu.memory_space<vmem>>, %arg7: memref<1x128xf32, #tpu.memory_space<vmem>>, %arg8: memref<8x128xf32, #tpu.memory_space<vmem>>, %arg9: memref<8x128xf32, #tpu.memory_space<vmem>>) attributes {dimension_semantics = [#tpu.dimension_semantics<parallel>], iteration_bounds = array<i64: 1>, scalar_prefetch = 0 : i64, scratch_operands = 0 : i64, tpu.core_type = #tpu.core_type<tc>, window_params = [{transform_indices = @transform_0, window_bounds = array<i64: 8, 1024>}, {pipeline_mode = #tpu.pipeline_mode<synchronous>, transform_indices = @transform_1, window_bounds = array<i64: 1024, 128>}, {pipeline_mode = #tpu.pipeline_mode<synchronous>, transform_indices = @transform_2, window_bounds = array<i64: 1, 128>}, {pipeline_mode = #tpu.pipeline_mode<synchronous>, transform_indices = @transform_3, window_bounds = array<i64: 128, 128>}, {pipeline_mode = #tpu.pipeline_mode<synchronous>, transform_indices = @transform_4, window_bounds = array<i64: 1, 128>}, {pipeline_mode = #tpu.pipeline_mode<synchronous>, transform_indices = @transform_5, window_bounds = array<i64: 128, 128>}, {pipeline_mode = #tpu.pipeline_mode<synchronous>, transform_indices = @transform_6, window_bounds = array<i64: 1, 128>}, {transform_indices = @transform_7, window_bounds = array<i64: 8, 128>}, {transform_indices = @transform_8, window_bounds = array<i64: 8, 128>}]} {
    %c0 = arith.constant 0 : index
    %c0_0 = arith.constant 0 : index
    %0 = vector.load %arg1[%c0, %c0_0] : memref<8x1024xbf16, #tpu.memory_space<vmem>>, vector<8x1024xbf16>
    %c0_1 = arith.constant 0 : index
    %c0_2 = arith.constant 0 : index
    %1 = vector.load %arg2[%c0_1, %c0_2] : memref<1024x128xbf16, #tpu.memory_space<vmem>>, vector<1024x128xbf16>
    %cst = arith.constant dense<0.000000e+00> : vector<8x128xf32>
    %2 = tpu.matmul %0, %1, %cst {dimension_numbers = #tpu.dot_dimension_numbers<[1], [0], [0], [1], [0, 0, 1, 1], [], []>} : vector<8x1024xbf16>, vector<1024x128xbf16>, vector<8x128xf32> -> vector<8x128xf32>
    %c0_3 = arith.constant 0 : index
    %c0_4 = arith.constant 0 : index
    %3 = vector.load %arg3[%c0_3, %c0_4] : memref<1x128xf32, #tpu.memory_space<vmem>>, vector<1x128xf32>
    %4 = vector.broadcast %3 : vector<1x128xf32> to vector<8x128xf32>
    %5 = arith.addf %2, %4 : vector<8x128xf32>
    %cst_5 = arith.constant 0.000000e+00 : f32
    %6 = vector.broadcast %cst_5 : f32 to vector<8x128xf32>
    %7 = arith.maximumf %5, %6 : vector<8x128xf32>
    %8 = arith.truncf %7 : vector<8x128xf32> to vector<8x128xbf16>
    %c0_6 = arith.constant 0 : index
    %c0_7 = arith.constant 0 : index
    %9 = vector.load %arg4[%c0_6, %c0_7] : memref<128x128xbf16, #tpu.memory_space<vmem>>, vector<128x128xbf16>
    %cst_8 = arith.constant dense<0.000000e+00> : vector<8x128xf32>
    %10 = tpu.matmul %8, %9, %cst_8 {dimension_numbers = #tpu.dot_dimension_numbers<[1], [0], [0], [1], [0, 0, 1, 1], [], []>} : vector<8x128xbf16>, vector<128x128xbf16>, vector<8x128xf32> -> vector<8x128xf32>
    %c0_9 = arith.constant 0 : index
    %c0_10 = arith.constant 0 : index
    %11 = vector.load %arg5[%c0_9, %c0_10] : memref<1x128xf32, #tpu.memory_space<vmem>>, vector<1x128xf32>
    %12 = vector.broadcast %11 : vector<1x128xf32> to vector<8x128xf32>
    %13 = arith.addf %10, %12 : vector<8x128xf32>
    %14 = arith.truncf %13 : vector<8x128xf32> to vector<8x128xbf16>
    %c0_11 = arith.constant 0 : index
    %c0_12 = arith.constant 0 : index
    %15 = vector.load %arg6[%c0_11, %c0_12] : memref<128x128xbf16, #tpu.memory_space<vmem>>, vector<128x128xbf16>
    %cst_13 = arith.constant dense<0.000000e+00> : vector<8x128xf32>
    %16 = tpu.matmul %14, %15, %cst_13 {dimension_numbers = #tpu.dot_dimension_numbers<[1], [0], [0], [1], [0, 0, 1, 1], [], []>} : vector<8x128xbf16>, vector<128x128xbf16>, vector<8x128xf32> -> vector<8x128xf32>
    %17 = arith.mulf %13, %13 : vector<8x128xf32>
    %cst_14 = arith.constant dense<0.000000e+00> : vector<8xf32>
    %18 = vector.multi_reduction <add>, %17, %cst_14 [1] : vector<8x128xf32> to vector<8xf32>
    %19 = vector.shape_cast %18 : vector<8xf32> to vector<8x1xf32>
    %cst_15 = arith.constant 1.000000e-24 : f32
    %20 = vector.broadcast %cst_15 : f32 to vector<8x1xf32>
    %21 = arith.maximumf %19, %20 : vector<8x1xf32>
    %22 = math.rsqrt %21 : vector<8x1xf32>
    %23 = vector.broadcast %22 : vector<8x1xf32> to vector<8x128xf32>
    %24 = arith.mulf %13, %23 : vector<8x128xf32>
    %c0_16 = arith.constant 0 : index
    %c0_17 = arith.constant 0 : index
    %25 = vector.load %arg8[%c0_16, %c0_17] : memref<8x128xf32, #tpu.memory_space<vmem>>, vector<8x128xf32>
    tpu.vector_store %arg8[%c0_16, %c0_17], %24 {strides = array<i32>} : memref<8x128xf32, #tpu.memory_space<vmem>>, vector<8x128xf32>,
    %26 = vector.broadcast %22 : vector<8x1xf32> to vector<8x128xf32>
    %27 = arith.mulf %16, %26 : vector<8x128xf32>
    %c0_18 = arith.constant 0 : index
    %c0_19 = arith.constant 0 : index
    %28 = vector.load %arg7[%c0_18, %c0_19] : memref<1x128xf32, #tpu.memory_space<vmem>>, vector<1x128xf32>
    %29 = vector.broadcast %28 : vector<1x128xf32> to vector<8x128xf32>
    %30 = arith.addf %27, %29 : vector<8x128xf32>
    %c0_20 = arith.constant 0 : index
    %c0_21 = arith.constant 0 : index
    %31 = vector.load %arg9[%c0_20, %c0_21] : memref<8x128xf32, #tpu.memory_space<vmem>>, vector<8x128xf32>
    tpu.vector_store %arg9[%c0_20, %c0_21], %30 {strides = array<i32>} : memref<8x128xf32, #tpu.memory_space<vmem>>, vector<8x128xf32>,
    return
  }
  func.func @transform_0(%arg0: i32) -> (i32, i32) {
    %c0_i32 = arith.constant 0 : i32
    %c0_i32_0 = arith.constant 0 : i32
    return %arg0, %c0_i32 : i32, i32
  }
  func.func @transform_1(%arg0: i32) -> (i32, i32) {
    %c0_i32 = arith.constant 0 : i32
    %c0_i32_0 = arith.constant 0 : i32
    %c0_i32_1 = arith.constant 0 : i32
    return %c0_i32, %c0_i32_0 : i32, i32
  }
  func.func @transform_2(%arg0: i32) -> (i32, i32) {
    %c0_i32 = arith.constant 0 : i32
    %c0_i32_0 = arith.constant 0 : i32
    %c0_i32_1 = arith.constant 0 : i32
    return %c0_i32, %c0_i32_0 : i32, i32
  }
  func.func @transform_3(%arg0: i32) -> (i32, i32) {
    %c0_i32 = arith.constant 0 : i32
    %c0_i32_0 = arith.constant 0 : i32
    %c0_i32_1 = arith.constant 0 : i32
    return %c0_i32, %c0_i32_0 : i32, i32
  }
  func.func @transform_4(%arg0: i32) -> (i32, i32) {
    %c0_i32 = arith.constant 0 : i32
    %c0_i32_0 = arith.constant 0 : i32
    %c0_i32_1 = arith.constant 0 : i32
    return %c0_i32, %c0_i32_0 : i32, i32
  }
  func.func @transform_5(%arg0: i32) -> (i32, i32) {
    %c0_i32 = arith.constant 0 : i32
    %c0_i32_0 = arith.constant 0 : i32
    %c0_i32_1 = arith.constant 0 : i32
    return %c0_i32, %c0_i32_0 : i32, i32
  }
  func.func @transform_6(%arg0: i32) -> (i32, i32) {
    %c0_i32 = arith.constant 0 : i32
    %c0_i32_0 = arith.constant 0 : i32
    %c0_i32_1 = arith.constant 0 : i32
    return %c0_i32, %c0_i32_0 : i32, i32
  }
  func.func @transform_7(%arg0: i32) -> (i32, i32) {
    %c0_i32 = arith.constant 0 : i32
    %c0_i32_0 = arith.constant 0 : i32
    return %arg0, %c0_i32 : i32, i32
  }
  func.func @transform_8(%arg0: i32) -> (i32, i32) {
    %c0_i32 = arith.constant 0 : i32
    %c0_i32_0 = arith.constant 0 : i32
    return %arg0, %c0_i32 : i32, i32
  }
}

</mosaic_0001>

<llo_original>
// kernel: metric_learning_forward.1
$region0: #{metric_learning_forward.1}
  #allocation0 [shape = 'u32[]', space=smem, size = 0x4, offset = 0x4, fixed_abs, tag = 'smem constant byte address 0x4 - core index']
  #allocation1 [shape = 'u32[72,128]{1,0:T(1,128)}', space=vmem, size = 0x9000, scoped, tag = 'internal scratch']
  %s0 = inlined_call_operand.vmem [shape: bf16[8,1024], index: 0, kind: input, shape index: {}]
  %s1 = inlined_call_operand.vmem [shape: bf16[1024,128], index: 1, kind: input, shape index: {}]
  %s2 = inlined_call_operand.vmem [shape: f32[1,128], index: 2, kind: input, shape index: {}]
  %s3 = inlined_call_operand.vmem [shape: bf16[128,128], index: 3, kind: input, shape index: {}]
  %s4 = inlined_call_operand.vmem [shape: f32[1,128], index: 4, kind: input, shape index: {}]
  %s5 = inlined_call_operand.vmem [shape: bf16[128,128], index: 5, kind: input, shape index: {}]
  %s6 = inlined_call_operand.vmem [shape: f32[1,128], index: 6, kind: input, shape index: {}]
  %s7 = inlined_call_operand.vmem [shape: f32[8,128], index: 7, kind: output, shape index: {0}]
  %s8 = inlined_call_operand.vmem [shape: f32[8,128], index: 8, kind: output, shape index: {1}]
  %9 = xla_tuple %s7, %s8
  %s10 = sld [smem:[#allocation0]]
  $region46: #{metric_learning_forward.1} parent=0
    _
  %s12 = ssub.s32 1, %s10
  %s13 = scalar_select 0, %s12, %s10
  // Predicated region
  $region2: #{metric_learning_forward.1} parent=0 // pred_check
    _
  $region3: #{metric_learning_forward.1} parent=0 // pred_check_branch
    %15 = sbr.rel (0) target = $region5
  $region4: #{metric_learning_forward.1} parent=0 // pred_region
    _
  $region5: #{metric_learning_forward.1} parent=0 // pred_fallthru
    _
  // Predicated region
  $region6: #{metric_learning_forward.1} parent=0 // pred_check
    _
  $region7: #{metric_learning_forward.1} parent=0 // pred_check_branch
    %17 = sbr.rel (0) target = $region9
  $region8: #{metric_learning_forward.1} parent=0 // pred_region
    _
  $region9: #{metric_learning_forward.1} parent=0 // pred_fallthru
    _
  // Predicated region
  $region10: #{metric_learning_forward.1} parent=0 // pred_check
    _
  $region11: #{metric_learning_forward.1} parent=0 // pred_check_branch
    %19 = sbr.rel (0) target = $region13
  $region12: #{metric_learning_forward.1} parent=0 // pred_region
    _
  $region13: #{metric_learning_forward.1} parent=0 // pred_fallthru
    _
  // Predicated region
  $region14: #{metric_learning_forward.1} parent=0 // pred_check
    _
  $region15: #{metric_learning_forward.1} parent=0 // pred_check_branch
    %21 = sbr.rel (0) target = $region17
  $region16: #{metric_learning_forward.1} parent=0 // pred_region
    _
  $region17: #{metric_learning_forward.1} parent=0 // pred_fallthru
    _
  // Predicated region
  $region18: #{metric_learning_forward.1} parent=0 // pred_check
    _
  $region19: #{metric_learning_forward.1} parent=0 // pred_check_branch
    %23 = sbr.rel (0) target = $region21
  $region20: #{metric_learning_forward.1} parent=0 // pred_region
    _
  $region21: #{metric_learning_forward.1} parent=0 // pred_fallthru
    _
  // Predicated region
  $region22: #{metric_learning_forward.1} parent=0 // pred_check
    _
  $region23: #{metric_learning_forward.1} parent=0 // pred_check_branch
    %25 = sbr.rel (0) target = $region25
  $region24: #{metric_learning_forward.1} parent=0 // pred_region
    _
  $region25: #{metric_learning_forward.1} parent=0 // pred_fallthru
    _
  // Predicated region
  $region26: #{metric_learning_forward.1} parent=0 // pred_check
    _
  $region27: #{metric_learning_forward.1} parent=0 // pred_check_branch
    %27 = sbr.rel (0) target = $region29
  $region28: #{metric_learning_forward.1} parent=0 // pred_region
    _
  $region29: #{metric_learning_forward.1} parent=0 // pred_fallthru
    _
  %v28 = vld [vmem:[%s0] sm:$0xff]
  %v29 = vld [vmem:[%s0 + $0x8] sm:$0xff]
  %v30 = vld [vmem:[%s0 + $0x10] sm:$0xff]
  %v31 = vld [vmem:[%s0 + $0x18] sm:$0xff]
  %v32 = vld [vmem:[%s1] sm:$0xf]
  %v33 = vld [vmem:[%s1 + $0x4] sm:$0xf]
  %v34 = vld [vmem:[%s1 + $0x8] sm:$0xf]
  %v35 = vld [vmem:[%s1 + $0xc] sm:$0xf]
  %v36 = vld [vmem:[%s1 + $0x10] sm:$0xf]
  %v37 = vld [vmem:[%s1 + $0x14] sm:$0xf]
  %v38 = vld [vmem:[%s1 + $0x18] sm:$0xf]
  %v39 = vld [vmem:[%s1 + $0x1c] sm:$0xf]
  %v40 = vld [vmem:[%s1 + $0x20] sm:$0xf]
  %v41 = vld [vmem:[%s1 + $0x24] sm:$0xf]
  %v42 = vld [vmem:[%s1 + $0x28] sm:$0xf]
  %v43 = vld [vmem:[%s1 + $0x2c] sm:$0xf]
  %v44 = vld [vmem:[%s1 + $0x30] sm:$0xf]
  %v45 = vld [vmem:[%s1 + $0x34] sm:$0xf]
  %v46 = vld [vmem:[%s1 + $0x38] sm:$0xf]
  %v47 = vld [vmem:[%s1 + $0x3c] sm:$0xf]
  %v48 = vld [vmem:[%s1 + $0x40] sm:$0xf]
  %v49 = vld [vmem:[%s1 + $0x44] sm:$0xf]
  %v50 = vld [vmem:[%s1 + $0x48] sm:$0xf]
  %v51 = vld [vmem:[%s1 + $0x4c] sm:$0xf]
  %v52 = vld [vmem:[%s1 + $0x50] sm:$0xf]
  %v53 = vld [vmem:[%s1 + $0x54] sm:$0xf]
  %v54 = vld [vmem:[%s1 + $0x58] sm:$0xf]
  %v55 = vld [vmem:[%s1 + $0x5c] sm:$0xf]
  %v56 = vld [vmem:[%s1 + $0x60] sm:$0xf]
  %v57 = vld [vmem:[%s1 + $0x64] sm:$0xf]
  %v58 = vld [vmem:[%s1 + $0x68] sm:$0xf]
  %v59 = vld [vmem:[%s1 + $0x6c] sm:$0xf]
  %v60 = vld [vmem:[%s1 + $0x70] sm:$0xf]
  %v61 = vld [vmem:[%s1 + $0x74] sm:$0xf]
  %v62 = vld [vmem:[%s1 + $0x78] sm:$0xf]
  %v63 = vld [vmem:[%s1 + $0x7c] sm:$0xf]
  %v64 = vld [vmem:[%s1 + $0x80] sm:$0xf]
  %v65 = vld [vmem:[%s1 + $0x84] sm:$0xf]
  %v66 = vld [vmem:[%s1 + $0x88] sm:$0xf]
  %v67 = vld [vmem:[%s1 + $0x8c] sm:$0xf]
  %v68 = vld [vmem:[%s1 + $0x90] sm:$0xf]
  %v69 = vld [vmem:[%s1 + $0x94] sm:$0xf]
  %v70 = vld [vmem:[%s1 + $0x98] sm:$0xf]
  %v71 = vld [vmem:[%s1 + $0x9c] sm:$0xf]
  %v72 = vld [vmem:[%s1 + $0xa0] sm:$0xf]
  %v73 = vld [vmem:[%s1 + $0xa4] sm:$0xf]
  %v74 = vld [vmem:[%s1 + $0xa8] sm:$0xf]
  %v75 = vld [vmem:[%s1 + $0xac] sm:$0xf]
  %v76 = vld [vmem:[%s1 + $0xb0] sm:$0xf]
  %v77 = vld [vmem:[%s1 + $0xb4] sm:$0xf]
  %v78 = vld [vmem:[%s1 + $0xb8] sm:$0xf]
  %v79 = vld [vmem:[%s1 + $0xbc] sm:$0xf]
  %v80 = vld [vmem:[%s1 + $0xc0] sm:$0xf]
  %v81 = vld [vmem:[%s1 + $0xc4] sm:$0xf]
  %v82 = vld [vmem:[%s1 + $0xc8] sm:$0xf]
  %v83 = vld [vmem:[%s1 + $0xcc] sm:$0xf]
  %v84 = vld [vmem:[%s1 + $0xd0] sm:$0xf]
  %v85 = vld [vmem:[%s1 + $0xd4] sm:$0xf]
  %v86 = vld [vmem:[%s1 + $0xd8] sm:$0xf]
  %v87 = vld [vmem:[%s1 + $0xdc] sm:$0xf]
  %v88 = vld [vmem:[%s1 + $0xe0] sm:$0xf]
  %v89 = vld [vmem:[%s1 + $0xe4] sm:$0xf]
  %v90 = vld [vmem:[%s1 + $0xe8] sm:$0xf]
  %v91 = vld [vmem:[%s1 + $0xec] sm:$0xf]
  %v92 = vld [vmem:[%s1 + $0xf0] sm:$0xf]
  %v93 = vld [vmem:[%s1 + $0xf4] sm:$0xf]
  %v94 = vld [vmem:[%s1 + $0xf8] sm:$0xf]
  %v95 = vld [vmem:[%s1 + $0xfc] sm:$0xf]
  %v96 = vld [vmem:[%s1 + $0x100] sm:$0xf]
  %v97 = vld [vmem:[%s1 + $0x104] sm:$0xf]
  %v98 = vld [vmem:[%s1 + $0x108] sm:$0xf]
  %v99 = vld [vmem:[%s1 + $0x10c] sm:$0xf]
  %v100 = vld [vmem:[%s1 + $0x110] sm:$0xf]
  %v101 = vld [vmem:[%s1 + $0x114] sm:$0xf]
  %v102 = vld [vmem:[%s1 + $0x118] sm:$0xf]
  %v103 = vld [vmem:[%s1 + $0x11c] sm:$0xf]
  %v104 = vld [vmem:[%s1 + $0x120] sm:$0xf]
  %v105 = vld [vmem:[%s1 + $0x124] sm:$0xf]
  %v106 = vld [vmem:[%s1 + $0x128] sm:$0xf]
  %v107 = vld [vmem:[%s1 + $0x12c] sm:$0xf]
  %v108 = vld [vmem:[%s1 + $0x130] sm:$0xf]
  %v109 = vld [vmem:[%s1 + $0x134] sm:$0xf]
  %v110 = vld [vmem:[%s1 + $0x138] sm:$0xf]
  %v111 = vld [vmem:[%s1 + $0x13c] sm:$0xf]
  %v112 = vld [vmem:[%s1 + $0x140] sm:$0xf]
  %v113 = vld [vmem:[%s1 + $0x144] sm:$0xf]
  %v114 = vld [vmem:[%s1 + $0x148] sm:$0xf]
  %v115 = vld [vmem:[%s1 + $0x14c] sm:$0xf]
  %v116 = vld [vmem:[%s1 + $0x150] sm:$0xf]
  %v117 = vld [vmem:[%s1 + $0x154] sm:$0xf]
  %v118 = vld [vmem:[%s1 + $0x158] sm:$0xf]
  %v119 = vld [vmem:[%s1 + $0x15c] sm:$0xf]
  %v120 = vld [vmem:[%s1 + $0x160] sm:$0xf]
  %v121 = vld [vmem:[%s1 + $0x164] sm:$0xf]
  %v122 = vld [vmem:[%s1 + $0x168] sm:$0xf]
  %v123 = vld [vmem:[%s1 + $0x16c] sm:$0xf]
  %v124 = vld [vmem:[%s1 + $0x170] sm:$0xf]
  %v125 = vld [vmem:[%s1 + $0x174] sm:$0xf]
  %v126 = vld [vmem:[%s1 + $0x178] sm:$0xf]
  %v127 = vld [vmem:[%s1 + $0x17c] sm:$0xf]
  %v128 = vld [vmem:[%s1 + $0x180] sm:$0xf]
  %v129 = vld [vmem:[%s1 + $0x184] sm:$0xf]
  %v130 = vld [vmem:[%s1 + $0x188] sm:$0xf]
  %v131 = vld [vmem:[%s1 + $0x18c] sm:$0xf]
  %v132 = vld [vmem:[%s1 + $0x190] sm:$0xf]
  %v133 = vld [vmem:[%s1 + $0x194] sm:$0xf]
  %v134 = vld [vmem:[%s1 + $0x198] sm:$0xf]
  %v135 = vld [vmem:[%s1 + $0x19c] sm:$0xf]
  %v136 = vld [vmem:[%s1 + $0x1a0] sm:$0xf]
  %v137 = vld [vmem:[%s1 + $0x1a4] sm:$0xf]
  %v138 = vld [vmem:[%s1 + $0x1a8] sm:$0xf]
  %v139 = vld [vmem:[%s1 + $0x1ac] sm:$0xf]
  %v140 = vld [vmem:[%s1 + $0x1b0] sm:$0xf]
  %v141 = vld [vmem:[%s1 + $0x1b4] sm:$0xf]
  %v142 = vld [vmem:[%s1 + $0x1b8] sm:$0xf]
  %v143 = vld [vmem:[%s1 + $0x1bc] sm:$0xf]
  %v144 = vld [vmem:[%s1 + $0x1c0] sm:$0xf]
  %v145 = vld [vmem:[%s1 + $0x1c4] sm:$0xf]
  %v146 = vld [vmem:[%s1 + $0x1c8] sm:$0xf]
  %v147 = vld [vmem:[%s1 + $0x1cc] sm:$0xf]
  %v148 = vld [vmem:[%s1 + $0x1d0] sm:$0xf]
  %v149 = vld [vmem:[%s1 + $0x1d4] sm:$0xf]
  %v150 = vld [vmem:[%s1 + $0x1d8] sm:$0xf]
  %v151 = vld [vmem:[%s1 + $0x1dc] sm:$0xf]
  %v152 = vld [vmem:[%s1 + $0x1e0] sm:$0xf]
  %v153 = vld [vmem:[%s1 + $0x1e4] sm:$0xf]
  %v154 = vld [vmem:[%s1 + $0x1e8] sm:$0xf]
  %v155 = vld [vmem:[%s1 + $0x1ec] sm:$0xf]
  %v156 = vld [vmem:[%s1 + $0x1f0] sm:$0xf]
  %v157 = vld [vmem:[%s1 + $0x1f4] sm:$0xf]
  %v158 = vld [vmem:[%s1 + $0x1f8] sm:$0xf]
  %v159 = vld [vmem:[%s1 + $0x1fc] sm:$0xf]
  %v160 = vld [vmem:[%s2] sm:$0x1]
  %v162 = vperm.slane %v160, 0
  %v168 = vunpack.c.l.b16 %v28
  %v169 = vunpack.c.h.b16 %v28
  %v170 = vunpack.c.l.b16 %v29
  %v171 = vunpack.c.h.b16 %v29
  %v172 = vunpack.c.l.b16 %v30
  %v173 = vunpack.c.h.b16 %v30
  %v174 = vunpack.c.l.b16 %v31
  %v175 = vunpack.c.h.b16 %v31
  %v176 = vpack.c.b16 %v168, %v168
  %v177 = vpack.c.b16 %v169, %v169
  %v178 = vpack.c.b16 %v170, %v170
  %v179 = vpack.c.b16 %v171, %v171
  %v180 = vpack.c.b16 %v172, %v172
  %v181 = vpack.c.b16 %v173, %v173
  %v182 = vpack.c.b16 %v174, %v174
  %v183 = vpack.c.b16 %v175, %v175
  %v320 = vunpack.c.l.b16 %v32
  %v321 = vunpack.c.l.b16 %v33
  %v322 = vunpack.c.l.b16 %v34
  %v323 = vunpack.c.l.b16 %v35
  %v324 = vunpack.c.l.b16 %v36
  %v325 = vunpack.c.l.b16 %v37
  %v326 = vunpack.c.l.b16 %v38
  %v327 = vunpack.c.l.b16 %v39
  %v328 = vunpack.c.l.b16 %v40
  %v329 = vunpack.c.l.b16 %v41
  %v330 = vunpack.c.l.b16 %v42
  %v331 = vunpack.c.l.b16 %v43
  %v332 = vunpack.c.l.b16 %v44
  %v333 = vunpack.c.l.b16 %v45
  %v334 = vunpack.c.l.b16 %v46
  %v335 = vunpack.c.l.b16 %v47
  %v336 = vunpack.c.l.b16 %v48
  %v337 = vunpack.c.l.b16 %v49
  %v338 = vunpack.c.l.b16 %v50
  %v339 = vunpack.c.l.b16 %v51
  %v340 = vunpack.c.l.b16 %v52
  %v341 = vunpack.c.l.b16 %v53
  %v342 = vunpack.c.l.b16 %v54
  %v343 = vunpack.c.l.b16 %v55
  %v344 = vunpack.c.l.b16 %v56
  %v345 = vunpack.c.l.b16 %v57
  %v346 = vunpack.c.l.b16 %v58
  %v347 = vunpack.c.l.b16 %v59
  %v348 = vunpack.c.l.b16 %v60
  %v349 = vunpack.c.l.b16 %v61
  %v350 = vunpack.c.l.b16 %v62
  %v351 = vunpack.c.l.b16 %v63
  %v352 = vunpack.c.l.b16 %v64
  %v353 = vunpack.c.l.b16 %v65
  %v354 = vunpack.c.l.b16 %v66
  %v355 = vunpack.c.l.b16 %v67
  %v356 = vunpack.c.l.b16 %v68
  %v357 = vunpack.c.l.b16 %v69
  %v358 = vunpack.c.l.b16 %v70
  %v359 = vunpack.c.l.b16 %v71
  %v360 = vunpack.c.l.b16 %v72
  %v361 = vunpack.c.l.b16 %v73
  %v362 = vunpack.c.l.b16 %v74
  %v363 = vunpack.c.l.b16 %v75
  %v364 = vunpack.c.l.b16 %v76
  %v365 = vunpack.c.l.b16 %v77
  %v366 = vunpack.c.l.b16 %v78
  %v367 = vunpack.c.l.b16 %v79
  %v368 = vunpack.c.l.b16 %v80
  %v369 = vunpack.c.l.b16 %v81
  %v370 = vunpack.c.l.b16 %v82
  %v371 = vunpack.c.l.b16 %v83
  %v372 = vunpack.c.l.b16 %v84
  %v373 = vunpack.c.l.b16 %v85
  %v374 = vunpack.c.l.b16 %v86
  %v375 = vunpack.c.l.b16 %v87
  %v376 = vunpack.c.l.b16 %v88
  %v377 = vunpack.c.l.b16 %v89
  %v378 = vunpack.c.l.b16 %v90
  %v379 = vunpack.c.l.b16 %v91
  %v380 = vunpack.c.l.b16 %v92
  %v381 = vunpack.c.l.b16 %v93
  %v382 = vunpack.c.l.b16 %v94
  %v383 = vunpack.c.l.b16 %v95
  %v384 = vunpack.c.l.b16 %v96
  %v385 = vunpack.c.l.b16 %v97
  %v386 = vunpack.c.l.b16 %v98
  %v387 = vunpack.c.l.b16 %v99
  %v388 = vunpack.c.l.b16 %v100
  %v389 = vunpack.c.l.b16 %v101
  %v390 = vunpack.c.l.b16 %v102
  %v391 = vunpack.c.l.b16 %v103
  %v392 = vunpack.c.l.b16 %v104
  %v393 = vunpack.c.l.b16 %v105
  %v394 = vunpack.c.l.b16 %v106
  %v395 = vunpack.c.l.b16 %v107
  %v396 = vunpack.c.l.b16 %v108
  %v397 = vunpack.c.l.b16 %v109
  %v398 = vunpack.c.l.b16 %v110
  %v399 = vunpack.c.l.b16 %v111
  %v400 = vunpack.c.l.b16 %v112
  %v401 = vunpack.c.l.b16 %v113
  %v402 = vunpack.c.l.b16 %v114
  %v403 = vunpack.c.l.b16 %v115
  %v404 = vunpack.c.l.b16 %v116
  %v405 = vunpack.c.l.b16 %v117
  %v406 = vunpack.c.l.b16 %v118
  %v407 = vunpack.c.l.b16 %v119
  %v408 = vunpack.c.l.b16 %v120
  %v409 = vunpack.c.l.b16 %v121
  %v410 = vunpack.c.l.b16 %v122
  %v411 = vunpack.c.l.b16 %v123
  %v412 = vunpack.c.l.b16 %v124
  %v413 = vunpack.c.l.b16 %v125
  %v414 = vunpack.c.l.b16 %v126
  %v415 = vunpack.c.l.b16 %v127
  %v416 = vunpack.c.l.b16 %v128
  %v417 = vunpack.c.l.b16 %v129
  %v418 = vunpack.c.l.b16 %v130
  %v419 = vunpack.c.l.b16 %v131
  %v420 = vunpack.c.l.b16 %v132
  %v421 = vunpack.c.l.b16 %v133
  %v422 = vunpack.c.l.b16 %v134
  %v423 = vunpack.c.l.b16 %v135
  %v424 = vunpack.c.l.b16 %v136
  %v425 = vunpack.c.l.b16 %v137
  %v426 = vunpack.c.l.b16 %v138
  %v427 = vunpack.c.l.b16 %v139
  %v428 = vunpack.c.l.b16 %v140
  %v429 = vunpack.c.l.b16 %v141
  %v430 = vunpack.c.l.b16 %v142
  %v431 = vunpack.c.l.b16 %v143
  %v432 = vunpack.c.l.b16 %v144
  %v433 = vunpack.c.l.b16 %v145
  %v434 = vunpack.c.l.b16 %v146
  %v435 = vunpack.c.l.b16 %v147
  %v436 = vunpack.c.l.b16 %v148
  %v437 = vunpack.c.l.b16 %v149
  %v438 = vunpack.c.l.b16 %v150
  %v439 = vunpack.c.l.b16 %v151
  %v440 = vunpack.c.l.b16 %v152
  %v441 = vunpack.c.l.b16 %v153
  %v442 = vunpack.c.l.b16 %v154
  %v443 = vunpack.c.l.b16 %v155
  %v444 = vunpack.c.l.b16 %v156
  %v445 = vunpack.c.l.b16 %v157
  %v446 = vunpack.c.l.b16 %v158
  %v447 = vunpack.c.l.b16 %v159
  %v448 = vpack.c.b16 %v321, %v320
  %v449 = vpack.c.b16 %v323, %v322
  %v450 = vpack.c.b16 %v325, %v324
  %v451 = vpack.c.b16 %v327, %v326
  %v452 = vpack.c.b16 %v329, %v328
  %v453 = vpack.c.b16 %v331, %v330
  %v454 = vpack.c.b16 %v333, %v332
  %v455 = vpack.c.b16 %v335, %v334
  %v456 = vpack.c.b16 %v337, %v336
  %v457 = vpack.c.b16 %v339, %v338
  %v458 = vpack.c.b16 %v341, %v340
  %v459 = vpack.c.b16 %v343, %v342
  %v460 = vpack.c.b16 %v345, %v344
  %v461 = vpack.c.b16 %v347, %v346
  %v462 = vpack.c.b16 %v349, %v348
  %v463 = vpack.c.b16 %v351, %v350
  %v464 = vpack.c.b16 %v353, %v352
  %v465 = vpack.c.b16 %v355, %v354
  %v466 = vpack.c.b16 %v357, %v356
  %v467 = vpack.c.b16 %v359, %v358
  %v468 = vpack.c.b16 %v361, %v360
  %v469 = vpack.c.b16 %v363, %v362
  %v470 = vpack.c.b16 %v365, %v364
  %v471 = vpack.c.b16 %v367, %v366
  %v472 = vpack.c.b16 %v369, %v368
  %v473 = vpack.c.b16 %v371, %v370
  %v474 = vpack.c.b16 %v373, %v372
  %v475 = vpack.c.b16 %v375, %v374
  %v476 = vpack.c.b16 %v377, %v376
  %v477 = vpack.c.b16 %v379, %v378
  %v478 = vpack.c.b16 %v381, %v380
  %v479 = vpack.c.b16 %v383, %v382
  %v480 = vpack.c.b16 %v385, %v384
  %v481 = vpack.c.b16 %v387, %v386
  %v482 = vpack.c.b16 %v389, %v388
  %v483 = vpack.c.b16 %v391, %v390
  %v484 = vpack.c.b16 %v393, %v392
  %v485 = vpack.c.b16 %v395, %v394
  %v486 = vpack.c.b16 %v397, %v396
  %v487 = vpack.c.b16 %v399, %v398
  %v488 = vpack.c.b16 %v401, %v400
  %v489 = vpack.c.b16 %v403, %v402
  %v490 = vpack.c.b16 %v405, %v404
  %v491 = vpack.c.b16 %v407, %v406
  %v492 = vpack.c.b16 %v409, %v408
  %v493 = vpack.c.b16 %v411, %v410
  %v494 = vpack.c.b16 %v413, %v412
  %v495 = vpack.c.b16 %v415, %v414
  %v496 = vpack.c.b16 %v417, %v416
  %v497 = vpack.c.b16 %v419, %v418
  %v498 = vpack.c.b16 %v421, %v420
  %v499 = vpack.c.b16 %v423, %v422
  %v500 = vpack.c.b16 %v425, %v424
  %v501 = vpack.c.b16 %v427, %v426
  %v502 = vpack.c.b16 %v429, %v428
  %v503 = vpack.c.b16 %v431, %v430
  %v504 = vpack.c.b16 %v433, %v432
  %v505 = vpack.c.b16 %v435, %v434
  %v506 = vpack.c.b16 %v437, %v436
  %v507 = vpack.c.b16 %v439, %v438
  %v508 = vpack.c.b16 %v441, %v440
  %v509 = vpack.c.b16 %v443, %v442
  %v510 = vpack.c.b16 %v445, %v444
  %v511 = vpack.c.b16 %v447, %v446
  %576 = vmatpush.bf16.msra.mxu0 %v455
  %577 = vmatpush.bf16.msra.mxu0 %v454
  %578 = vmatpush.bf16.msra.mxu0 %v453
  %579 = vmatpush.bf16.msra.mxu0 %v452
  %580 = vmatpush.bf16.msra.mxu0 %v451
  %581 = vmatpush.bf16.msra.mxu0 %v450
  %582 = vmatpush.bf16.msra.mxu0 %v449
  %583 = vmatpush.bf16.msra.mxu0 %v448
  %584 = vmatmul.bf16.gmra.mxu0 %v176
  %v585 = vpop.f32.mrf.mxu0
  %v586 = vadd.f32 %v162, %v585
  %v587 = vpop.f32.mrf.mxu0
  %588 = vdwg.mxu0
  %589 = vmatpush.bf16.msra.mxu0 %v463
  %590 = vmatpush.bf16.msra.mxu0 %v462
  %591 = vmatpush.bf16.msra.mxu0 %v461
  %592 = vmatpush.bf16.msra.mxu0 %v460
  %593 = vmatpush.bf16.msra.mxu0 %v459
  %594 = vmatpush.bf16.msra.mxu0 %v458
  %595 = vmatpush.bf16.msra.mxu0 %v457
  %596 = vmatpush.bf16.msra.mxu0 %v456
  %597 = vmatmul.bf16.gmra.mxu0 %v177
  %v598 = vpop.f32.mrf.mxu0
  %v599 = vadd.f32 %v586, %v598
  %v600 = vpop.f32.mrf.mxu0
  %601 = vdwg.mxu0
  %602 = vmatpush.bf16.msra.mxu0 %v471
  %603 = vmatpush.bf16.msra.mxu0 %v470
  %604 = vmatpush.bf16.msra.mxu0 %v469
  %605 = vmatpush.bf16.msra.mxu0 %v468
  %606 = vmatpush.bf16.msra.mxu0 %v467
  %607 = vmatpush.bf16.msra.mxu0 %v466
  %608 = vmatpush.bf16.msra.mxu0 %v465
  %609 = vmatpush.bf16.msra.mxu0 %v464
  %610 = vmatmul.bf16.gmra.mxu0 %v178
  %v611 = vpop.f32.mrf.mxu0
  %v612 = vadd.f32 %v599, %v611
  %v613 = vpop.f32.mrf.mxu0
  %614 = vdwg.mxu0
  %615 = vmatpush.bf16.msra.mxu0 %v479
  %616 = vmatpush.bf16.msra.mxu0 %v478
  %617 = vmatpush.bf16.msra.mxu0 %v477
  %618 = vmatpush.bf16.msra.mxu0 %v476
  %619 = vmatpush.bf16.msra.mxu0 %v475
  %620 = vmatpush.bf16.msra.mxu0 %v474
  %621 = vmatpush.bf16.msra.mxu0 %v473
  %622 = vmatpush.bf16.msra.mxu0 %v472
  %623 = vmatmul.bf16.gmra.mxu0 %v179
  %v624 = vpop.f32.mrf.mxu0
  %v625 = vadd.f32 %v612, %v624
  %v626 = vpop.f32.mrf.mxu0
  %627 = vdwg.mxu0
  %628 = vmatpush.bf16.msra.mxu0 %v487
  %629 = vmatpush.bf16.msra.mxu0 %v486
  %630 = vmatpush.bf16.msra.mxu0 %v485
  %631 = vmatpush.bf16.msra.mxu0 %v484
  %632 = vmatpush.bf16.msra.mxu0 %v483
  %633 = vmatpush.bf16.msra.mxu0 %v482
  %634 = vmatpush.bf16.msra.mxu0 %v481
  %635 = vmatpush.bf16.msra.mxu0 %v480
  %636 = vmatmul.bf16.gmra.mxu0 %v180
  %v637 = vpop.f32.mrf.mxu0
  %v638 = vadd.f32 %v625, %v637
  %v639 = vpop.f32.mrf.mxu0
  %640 = vdwg.mxu0
  %641 = vmatpush.bf16.msra.mxu0 %v495
  %642 = vmatpush.bf16.msra.mxu0 %v494
  %643 = vmatpush.bf16.msra.mxu0 %v493
  %644 = vmatpush.bf16.msra.mxu0 %v492
  %645 = vmatpush.bf16.msra.mxu0 %v491
  %646 = vmatpush.bf16.msra.mxu0 %v490
  %647 = vmatpush.bf16.msra.mxu0 %v489
  %648 = vmatpush.bf16.msra.mxu0 %v488
  %649 = vmatmul.bf16.gmra.mxu0 %v181
  %v650 = vpop.f32.mrf.mxu0
  %v651 = vadd.f32 %v638, %v650
  %v652 = vpop.f32.mrf.mxu0
  %653 = vdwg.mxu0
  %654 = vmatpush.bf16.msra.mxu0 %v503
  %655 = vmatpush.bf16.msra.mxu0 %v502
  %656 = vmatpush.bf16.msra.mxu0 %v501
  %657 = vmatpush.bf16.msra.mxu0 %v500
  %658 = vmatpush.bf16.msra.mxu0 %v499
  %659 = vmatpush.bf16.msra.mxu0 %v498
  %660 = vmatpush.bf16.msra.mxu0 %v497
  %661 = vmatpush.bf16.msra.mxu0 %v496
  %662 = vmatmul.bf16.gmra.mxu0 %v182
  %v663 = vpop.f32.mrf.mxu0
  %v664 = vadd.f32 %v651, %v663
  %v665 = vpop.f32.mrf.mxu0
  %666 = vdwg.mxu0
  %667 = vmatpush.bf16.msra.mxu0 %v511
  %668 = vmatpush.bf16.msra.mxu0 %v510
  %669 = vmatpush.bf16.msra.mxu0 %v509
  %670 = vmatpush.bf16.msra.mxu0 %v508
  %671 = vmatpush.bf16.msra.mxu0 %v507
  %672 = vmatpush.bf16.msra.mxu0 %v506
  %673 = vmatpush.bf16.msra.mxu0 %v505
  %674 = vmatpush.bf16.msra.mxu0 %v504
  %675 = vmatmul.bf16.gmra.mxu0 %v183
  %v676 = vpop.f32.mrf.mxu0
  %v677 = vadd.f32 %v664, %v676
  %v678 = vpop.f32.mrf.mxu0
  %679 = vdwg.mxu0
  %v680 = vmax.f32 %v677, 0.0
  %v681 = vpack.c.bf16 %v680, %v680
  %v682 = vld [vmem:[%s3] sm:$0xf]
  %v683 = vld [vmem:[%s3 + $0x4] sm:$0xf]
  %v684 = vld [vmem:[%s3 + $0x8] sm:$0xf]
  %v685 = vld [vmem:[%s3 + $0xc] sm:$0xf]
  %v686 = vld [vmem:[%s3 + $0x10] sm:$0xf]
  %v687 = vld [vmem:[%s3 + $0x14] sm:$0xf]
  %v688 = vld [vmem:[%s3 + $0x18] sm:$0xf]
  %v689 = vld [vmem:[%s3 + $0x1c] sm:$0xf]
  %v690 = vld [vmem:[%s3 + $0x20] sm:$0xf]
  %v691 = vld [vmem:[%s3 + $0x24] sm:$0xf]
  %v692 = vld [vmem:[%s3 + $0x28] sm:$0xf]
  %v693 = vld [vmem:[%s3 + $0x2c] sm:$0xf]
  %v694 = vld [vmem:[%s3 + $0x30] sm:$0xf]
  %v695 = vld [vmem:[%s3 + $0x34] sm:$0xf]
  %v696 = vld [vmem:[%s3 + $0x38] sm:$0xf]
  %v697 = vld [vmem:[%s3 + $0x3c] sm:$0xf]
  %v698 = vld [vmem:[%s4] sm:$0x1]
  %v700 = vperm.slane %v698, 0
  %v718 = vunpack.c.l.b16 %v682
  %v719 = vunpack.c.l.b16 %v683
  %v720 = vunpack.c.l.b16 %v684
  %v721 = vunpack.c.l.b16 %v685
  %v722 = vunpack.c.l.b16 %v686
  %v723 = vunpack.c.l.b16 %v687
  %v724 = vunpack.c.l.b16 %v688
  %v725 = vunpack.c.l.b16 %v689
  %v726 = vunpack.c.l.b16 %v690
  %v727 = vunpack.c.l.b16 %v691
  %v728 = vunpack.c.l.b16 %v692
  %v729 = vunpack.c.l.b16 %v693
  %v730 = vunpack.c.l.b16 %v694
  %v731 = vunpack.c.l.b16 %v695
  %v732 = vunpack.c.l.b16 %v696
  %v733 = vunpack.c.l.b16 %v697
  %v734 = vpack.c.b16 %v719, %v718
  %v735 = vpack.c.b16 %v721, %v720
  %v736 = vpack.c.b16 %v723, %v722
  %v737 = vpack.c.b16 %v725, %v724
  %v738 = vpack.c.b16 %v727, %v726
  %v739 = vpack.c.b16 %v729, %v728
  %v740 = vpack.c.b16 %v731, %v730
  %v741 = vpack.c.b16 %v733, %v732
  %750 = vmatpush.bf16.msra.mxu0 %v741
  %751 = vmatpush.bf16.msra.mxu0 %v740
  %752 = vmatpush.bf16.msra.mxu0 %v739
  %753 = vmatpush.bf16.msra.mxu0 %v738
  %754 = vmatpush.bf16.msra.mxu0 %v737
  %755 = vmatpush.bf16.msra.mxu0 %v736
  %756 = vmatpush.bf16.msra.mxu0 %v735
  %757 = vmatpush.bf16.msra.mxu0 %v734
  %758 = vmatmul.bf16.gmra.mxu0 %v681
  %v759 = vpop.f32.mrf.mxu0
  %v760 = vadd.f32 %v700, %v759
  %v761 = vpop.f32.mrf.mxu0
  %762 = vdwg.mxu0
  %v763 = vpack.c.bf16 %v760, %v760
  %v764 = vld [vmem:[%s5] sm:$0xf]
  %v765 = vld [vmem:[%s5 + $0x4] sm:$0xf]
  %v766 = vld [vmem:[%s5 + $0x8] sm:$0xf]
  %v767 = vld [vmem:[%s5 + $0xc] sm:$0xf]
  %v768 = vld [vmem:[%s5 + $0x10] sm:$0xf]
  %v769 = vld [vmem:[%s5 + $0x14] sm:$0xf]
  %v770 = vld [vmem:[%s5 + $0x18] sm:$0xf]
  %v771 = vld [vmem:[%s5 + $0x1c] sm:$0xf]
  %v772 = vld [vmem:[%s5 + $0x20] sm:$0xf]
  %v773 = vld [vmem:[%s5 + $0x24] sm:$0xf]
  %v774 = vld [vmem:[%s5 + $0x28] sm:$0xf]
  %v775 = vld [vmem:[%s5 + $0x2c] sm:$0xf]
  %v776 = vld [vmem:[%s5 + $0x30] sm:$0xf]
  %v777 = vld [vmem:[%s5 + $0x34] sm:$0xf]
  %v778 = vld [vmem:[%s5 + $0x38] sm:$0xf]
  %v779 = vld [vmem:[%s5 + $0x3c] sm:$0xf]
  %v796 = vunpack.c.l.b16 %v764
  %v797 = vunpack.c.l.b16 %v765
  %v798 = vunpack.c.l.b16 %v766
  %v799 = vunpack.c.l.b16 %v767
  %v800 = vunpack.c.l.b16 %v768
  %v801 = vunpack.c.l.b16 %v769
  %v802 = vunpack.c.l.b16 %v770
  %v803 = vunpack.c.l.b16 %v771
  %v804 = vunpack.c.l.b16 %v772
  %v805 = vunpack.c.l.b16 %v773
  %v806 = vunpack.c.l.b16 %v774
  %v807 = vunpack.c.l.b16 %v775
  %v808 = vunpack.c.l.b16 %v776
  %v809 = vunpack.c.l.b16 %v777
  %v810 = vunpack.c.l.b16 %v778
  %v811 = vunpack.c.l.b16 %v779
  %v812 = vpack.c.b16 %v797, %v796
  %v813 = vpack.c.b16 %v799, %v798
  %v814 = vpack.c.b16 %v801, %v800
  %v815 = vpack.c.b16 %v803, %v802
  %v816 = vpack.c.b16 %v805, %v804
  %v817 = vpack.c.b16 %v807, %v806
  %v818 = vpack.c.b16 %v809, %v808
  %v819 = vpack.c.b16 %v811, %v810
  %828 = vmatpush.bf16.msra.mxu0 %v819
  %829 = vmatpush.bf16.msra.mxu0 %v818
  %830 = vmatpush.bf16.msra.mxu0 %v817
  %831 = vmatpush.bf16.msra.mxu0 %v816
  %832 = vmatpush.bf16.msra.mxu0 %v815
  %833 = vmatpush.bf16.msra.mxu0 %v814
  %834 = vmatpush.bf16.msra.mxu0 %v813
  %835 = vmatpush.bf16.msra.mxu0 %v812
  %836 = vmatmul.bf16.gmra.mxu0 %v763
  %v837 = vpop.f32.mrf.mxu0
  %v838 = vadd.f32 0.0, %v837
  %v839 = vpop.f32.mrf.mxu0
  %840 = vdwg.mxu0
  %v841 = vmul.f32 %v760, %v760
  %842 = vadd.xlane.f32.xlu0 %v841
  %v843 = vpop.xlane.xlu0 %842
  %v844 = vmax.f32 %v843, 1e-24
  %v845 = vrsqrt.pop %v844
  %v846 = vmul.f32 %v845, %v844
  %v847 = vmul.f32 %v846, %v845
  %v848 = vmul.f32 0.5, %v847
  %v849 = vsub.f32 1.5, %v848
  %v850 = vmul.f32 %v845, %v849
  %vm851 = vweird.f32 %v844
  %vm852 = vweird.f32 %v845
  %vm853 = vmor %vm851, %vm852
  %v854 = vsel %vm853, %v845, %v850
  %v855 = vmul.f32 %v760, %v854
  %856 = vst [vmem:[%s7] sm:$0xff] %v855
  %v857 = vmul.f32 %v838, %v854
  %v858 = vld [vmem:[%s6] sm:$0x1]
  %v860 = vperm.slane %v858, 0
  %v862 = vadd.f32 %v857, %v860
  %863 = vst [vmem:[%s8] sm:$0xff] %v862
  // Predicated region
  $region30: #{metric_learning_forward.1} parent=0 // pred_check
    _
  $region31: #{metric_learning_forward.1} parent=0 // pred_check_branch
    %865 = sbr.rel (0) target = $region33
  $region32: #{metric_learning_forward.1} parent=0 // pred_region
    _
  $region33: #{metric_learning_forward.1} parent=0 // pred_fallthru
    _
  // Predicated region
  $region34: #{metric_learning_forward.1} parent=0 // pred_check
    _
  $region35: #{metric_learning_forward.1} parent=0 // pred_check_branch
    %867 = sbr.rel (0) target = $region37
  $region36: #{metric_learning_forward.1} parent=0 // pred_region
    _
  $region37: #{metric_learning_forward.1} parent=0 // pred_fallthru
    _
  // Predicated region
  $region38: #{metric_learning_forward.1} parent=0 // pred_check
    _
  $region39: #{metric_learning_forward.1} parent=0 // pred_check_branch
    %869 = sbr.rel (0) target = $region41
  $region40: #{metric_learning_forward.1} parent=0 // pred_region
    _
  $region41: #{metric_learning_forward.1} parent=0 // pred_fallthru
    _
  // Predicated region
  $region42: #{metric_learning_forward.1} parent=0 // pred_check
    _
  $region43: #{metric_learning_forward.1} parent=0 // pred_check_branch
    %871 = sbr.rel (0) target = $region45
  $region44: #{metric_learning_forward.1} parent=0 // pred_region
    _
  $region45: #{metric_learning_forward.1} parent=0 // pred_fallthru
    _

</llo_original>
